<compile_context>
chip_gen: v7x
topology: tpu7x:2x2x1
jax: 0.10.0
libtpu: 0.0.40
codegen_flags: <defaults>
</compile_context>

<pallas_src>
import functools

import jax
import jax.numpy as jnp
from jax.experimental import pallas as pl
from jax.experimental.pallas import tpu as pltpu

# Real / padded (lane-friendly) dims.
_D_IN_RAW = 63    # 3 * 21
_D_IN = 64        # padded contraction dim for fc1
_H1 = 512         # 500 -> 512
_H2 = 128         # already aligned
_D_OUT_RAW = 14
_D_OUT = 128      # 14 -> 128 (lane-dense output slab)


def _mlp_kernel(x_ref, w1_ref, b1_ref, w2_ref, b2_ref, w3_ref, b3_ref, o_ref,
                xpad_ref):
    """Fused 3-layer MLP on one (TB, 63) batch tile.

    The 63->64 zero-pad and the cast to the MXU dtype happen here on the VMEM
    tile, so no padded/cast copy of x is ever written back to HBM.  Weights and
    biases use constant index_maps and stay VMEM-resident across grid steps.
    All matmuls accumulate in f32 on the MXU.
    """
    tb = x_ref.shape[0]
    # Fused pad + cast: real 63 lanes, plus one explicitly zeroed lane.  The
    # zero column is rewritten every step (megacore-safe: no reliance on
    # program_id == 0 ever running on this core).
    xpad_ref[:, :_D_IN_RAW] = x_ref[...].astype(xpad_ref.dtype)
    xpad_ref[:, _D_IN_RAW:] = jnp.zeros((tb, _D_IN - _D_IN_RAW), xpad_ref.dtype)
    x = xpad_ref[...]                                                   # (TB, 64)

    h1 = jnp.dot(x, w1_ref[...], preferred_element_type=jnp.float32) + b1_ref[...]
    h1 = jnp.maximum(h1, 0.0)                                           # (TB, 512) f32
    h2 = jnp.dot(h1.astype(w2_ref.dtype), w2_ref[...],
                 preferred_element_type=jnp.float32) + b2_ref[...]
    h2 = jnp.maximum(h2, 0.0)                                           # (TB, 128) f32
    out = jnp.dot(h2.astype(w3_ref.dtype), w3_ref[...],
                  preferred_element_type=jnp.float32) + b3_ref[...]
    o_ref[...] = out.astype(o_ref.dtype)                                # (TB, 128)


def prepare_params(params, *, use_bf16=True):
    """Pad ragged dims to lane multiples and cast matmul operands to the MXU
    dtype ONCE.  Call this once per parameter set and reuse the result; doing it
    per forward call adds ~10 tiny XLA dispatches that dominate small-batch
    latency."""
    w1, b1, w2, b2, w3, b3 = params  # (63,500),(1,500),(500,128),(1,128),(128,14),(1,14)
    mxu_dtype = jnp.bfloat16 if use_bf16 else jnp.float32
    w1p = jnp.pad(w1, ((0, _D_IN - 63), (0, _H1 - 500))).astype(mxu_dtype)   # (64, 512)
    b1p = jnp.pad(b1, ((0, 0), (0, _H1 - 500))).astype(jnp.float32)          # (1, 512)
    w2p = jnp.pad(w2, ((0, _H1 - 500), (0, 0))).astype(mxu_dtype)            # (512, 128)
    b2p = b2.astype(jnp.float32)                                             # (1, 128)
    w3p = jnp.pad(w3, ((0, 0), (0, _D_OUT - 14))).astype(mxu_dtype)          # (128, 128)
    b3p = jnp.pad(b3, ((0, 0), (0, _D_OUT - 14))).astype(jnp.float32)        # (1, 128)
    return (w1p, b1p, w2p, b2p, w3p, b3p)


def _round_up(v, m):
    return ((v + m - 1) // m) * m


@functools.partial(jax.jit, static_argnames=("block_batch", "padded_output"))
def gesture_fc_type_consonant_forward(x, prepared_params, *, block_batch=4096,
                                      padded_output=False):
    """x: any shape reshapeable to (-1, 63).  prepared_params: prepare_params(...).

    Returns (batch, 14) float32 (module semantics).  With padded_output=True,
    returns the raw (batch_padded, 128) f32 slab with zero extra HBM passes;
    the consumer can slice [:batch, :14] inside its own fusion.
    """
    w1p, b1p, w2p, b2p, w3p, b3p = prepared_params
    mxu_dtype = w1p.dtype

    x2d = x.reshape(-1, _D_IN_RAW)            # glue reshape stays in plain JAX
    batch = x2d.shape[0]

    # Batch tile: multiple of 16 (bf16 packs 2 rows/sublane), large by default to
    # amortize the ~0.35 us/step grid overhead, but capped so any batch >= 32
    # produces >= 2 grid steps (DMA/compute overlap + v7x dual-TC sharding).
    tb = min(_round_up(max(block_batch, 16), 16), _round_up(batch, 16))
    if batch >= 32:
        tb = min(tb, _round_up(-(-batch // 2), 16))
    batch_p = _round_up(batch, tb)
    if batch_p != batch:
        x2d = jnp.pad(x2d, ((0, batch_p - batch), (0, 0)))
    grid = (batch_p // tb,)

    # Per-step footprint ~ 6 KiB/row (x + out double buffers, f32 intermediates,
    # bf16 copies, pad scratch) + resident weights; add cushion, keep under v7x
    # VMEM for the default TB=4096 (~36 MiB).
    vmem_limit = int(min(100 * 1024 * 1024,
                         max(32 * 1024 * 1024, tb * 8192 + 4 * 1024 * 1024)))

    const = lambda shape: pl.BlockSpec(shape, lambda i: (0, 0))

    out = pl.pallas_call(
        _mlp_kernel,
        out_shape=jax.ShapeDtypeStruct((batch_p, _D_OUT), jnp.float32),
        grid=grid,
        in_specs=[
            pl.BlockSpec((tb, _D_IN_RAW), lambda i: (i, 0)),  # x tile, raw 63 lanes
            const((_D_IN, _H1)),                              # w1 (VMEM-resident)
            const((1, _H1)),                                  # b1
            const((_H1, _H2)),                                # w2
            const((1, _H2)),                                  # b2
            const((_H2, _D_OUT)),                             # w3
            const((1, _D_OUT)),                               # b3
        ],
        out_specs=pl.BlockSpec((tb, _D_OUT), lambda i: (i, 0)),
        scratch_shapes=[pltpu.VMEM((tb, _D_IN), mxu_dtype)],  # fused pad+cast tile
        compiler_params=pltpu.CompilerParams(
            dimension_semantics=("parallel",),                # shard batch across TCs
            vmem_limit_bytes=vmem_limit,
        ),
    )(x2d, w1p, b1p, w2p, b2p, w3p, b3p)

    if padded_output:
        return out
    return out[:batch, :_D_OUT_RAW]


def init_params(key):
    """Deterministic synthetic initialization matching nn.Linear shapes
    (weights stored transposed as (in, out))."""
    k1, k2, k3, k4, k5, k6 = jax.random.split(key, 6)

    def uniform(k, shape, fan_in):
        bound = 1.0 / jnp.sqrt(fan_in)
        return jax.random.uniform(k, shape, jnp.float32, -bound, bound)

    w1 = uniform(k1, (63, 500), 63)
    b1 = uniform(k2, (1, 500), 63)
    w2 = uniform(k3, (500, 128), 500)
    b2 = uniform(k4, (1, 128), 500)
    w3 = uniform(k5, (128, 14), 128)
    b3 = uniform(k6, (1, 14), 128)
    return (w1, b1, w2, b2, w3, b3)


def _reference(x, params):
    w1, b1, w2, b2, w3, b3 = params
    xr = x.reshape(-1, 63).astype(jnp.float32)
    h = jnp.maximum(xr @ w1 + b1, 0.0)
    h = jnp.maximum(h @ w2 + b2, 0.0)
    return h @ w3 + b3


if __name__ == "__main__":
    key = jax.random.PRNGKey(0)
    pkey, xkey1, xkey2 = jax.random.split(key, 3)
    params = init_params(pkey)
    params_f32 = prepare_params(params, use_bf16=False)   # prepared once, reused
    params_bf16 = prepare_params(params, use_bf16=True)

    # --- test 1: tiny batch (4 frames of 21 keypoints x 3 coords), f32 path ---
    x_small = jax.random.normal(xkey1, (4, 21, 3), dtype=jnp.float32)
    out_f32 = jax.block_until_ready(
        gesture_fc_type_consonant_forward(x_small, params_f32))
    ref_small = _reference(x_small, params)
    assert out_f32.shape == (4, 14), out_f32.shape
    assert jnp.allclose(out_f32, ref_small, atol=1e-4, rtol=1e-4), (
        float(jnp.max(jnp.abs(out_f32 - ref_small))))

    # --- test 2: bf16 MXU path on the same input (loose tolerance vs f32 ref) ---
    out_bf16 = jax.block_until_ready(
        gesture_fc_type_consonant_forward(x_small, params_bf16))
    assert jnp.allclose(out_bf16, ref_small, atol=3e-2, rtol=3e-2), (
        float(jnp.max(jnp.abs(out_bf16 - ref_small))))

    # --- test 3: batch=40 exercises the grid-count-aware cap (tb=32, grid=(2,)) ---
    x_med = jax.random.normal(xkey2, (40, 21, 3), dtype=jnp.float32)
    out_med = jax.block_until_ready(
        gesture_fc_type_consonant_forward(x_med, params_f32))
    ref_med = _reference(x_med, params)
    assert out_med.shape == (40, 14), out_med.shape
    assert jnp.allclose(out_med, ref_med, atol=1e-4, rtol=1e-4), (
        float(jnp.max(jnp.abs(out_med - ref_med))))

    # --- test 4: small explicit block (grid=(3,)) + padded-slab output path ---
    out_pad = jax.block_until_ready(
        gesture_fc_type_consonant_forward(x_med, params_f32, block_batch=16,
                                          padded_output=True))
    assert out_pad.shape == (48, 128), out_pad.shape
    assert jnp.allclose(out_pad[:40, :14], ref_med, atol=1e-4, rtol=1e-4), (
        float(jnp.max(jnp.abs(out_pad[:40, :14] - ref_med))))

    print("KERNEL_OK")
</pallas_src>

<mosaic_0001>
module attributes {stable_mosaic.version = 11 : i64} {
  func.func @_mlp_kernel(%arg0: i32, %arg1: memref<16x63xf32, #tpu.memory_space<vmem>>, %arg2: memref<64x512xf32, #tpu.memory_space<vmem>>, %arg3: memref<1x512xf32, #tpu.memory_space<vmem>>, %arg4: memref<512x128xf32, #tpu.memory_space<vmem>>, %arg5: memref<1x128xf32, #tpu.memory_space<vmem>>, %arg6: memref<128x128xf32, #tpu.memory_space<vmem>>, %arg7: memref<1x128xf32, #tpu.memory_space<vmem>>, %arg8: memref<16x128xf32, #tpu.memory_space<vmem>>, %arg9: memref<16x64xf32, #tpu.memory_space<vmem>>) attributes {dimension_semantics = [#tpu.dimension_semantics<parallel>], iteration_bounds = array<i64: 1>, scalar_prefetch = 0 : i64, scratch_operands = 1 : i64, tpu.core_type = #tpu.core_type<tc>, window_params = [{transform_indices = @transform_0, window_bounds = array<i64: 16, 63>}, {pipeline_mode = #tpu.pipeline_mode<synchronous>, transform_indices = @transform_1, window_bounds = array<i64: 64, 512>}, {pipeline_mode = #tpu.pipeline_mode<synchronous>, transform_indices = @transform_2, window_bounds = array<i64: 1, 512>}, {pipeline_mode = #tpu.pipeline_mode<synchronous>, transform_indices = @transform_3, window_bounds = array<i64: 512, 128>}, {pipeline_mode = #tpu.pipeline_mode<synchronous>, transform_indices = @transform_4, window_bounds = array<i64: 1, 128>}, {pipeline_mode = #tpu.pipeline_mode<synchronous>, transform_indices = @transform_5, window_bounds = array<i64: 128, 128>}, {pipeline_mode = #tpu.pipeline_mode<synchronous>, transform_indices = @transform_6, window_bounds = array<i64: 1, 128>}, {transform_indices = @transform_7, window_bounds = array<i64: 16, 128>}]} {
    %c0 = arith.constant 0 : index
    %c0_0 = arith.constant 0 : index
    %0 = vector.load %arg1[%c0, %c0_0] : memref<16x63xf32, #tpu.memory_space<vmem>>, vector<16x63xf32>
    %c0_1 = arith.constant 0 : index
    %c0_2 = arith.constant 0 : index
    %1 = vector.load %arg9[%c0_1, %c0_2] : memref<16x64xf32, #tpu.memory_space<vmem>>, vector<16x63xf32>
    tpu.vector_store %arg9[%c0_1, %c0_2], %0 {strides = array<i32>} : memref<16x64xf32, #tpu.memory_space<vmem>>, vector<16x63xf32>,
    %cst = arith.constant 0.000000e+00 : f32
    %2 = vector.broadcast %cst : f32 to vector<16x1xf32>
    %c0_3 = arith.constant 0 : index
    %c63 = arith.constant 63 : index
    %3 = vector.load %arg9[%c0_3, %c63] : memref<16x64xf32, #tpu.memory_space<vmem>>, vector<16x1xf32>
    tpu.vector_store %arg9[%c0_3, %c63], %2 {strides = array<i32>} : memref<16x64xf32, #tpu.memory_space<vmem>>, vector<16x1xf32>,
    %c0_4 = arith.constant 0 : index
    %c0_5 = arith.constant 0 : index
    %4 = vector.load %arg9[%c0_4, %c0_5] : memref<16x64xf32, #tpu.memory_space<vmem>>, vector<16x64xf32>
    %c0_6 = arith.constant 0 : index
    %c0_7 = arith.constant 0 : index
    %5 = vector.load %arg2[%c0_6, %c0_7] : memref<64x512xf32, #tpu.memory_space<vmem>>, vector<64x512xf32>
    %cst_8 = arith.constant dense<0.000000e+00> : vector<16x512xf32>
    %6 = tpu.matmul %4, %5, %cst_8 {dimension_numbers = #tpu.dot_dimension_numbers<[1], [0], [0], [1], [0, 0, 1, 1], [], []>} : vector<16x64xf32>, vector<64x512xf32>, vector<16x512xf32> -> vector<16x512xf32>
    %c0_9 = arith.constant 0 : index
    %c0_10 = arith.constant 0 : index
    %7 = vector.load %arg3[%c0_9, %c0_10] : memref<1x512xf32, #tpu.memory_space<vmem>>, vector<1x512xf32>
    %8 = vector.broadcast %7 : vector<1x512xf32> to vector<16x512xf32>
    %9 = arith.addf %6, %8 : vector<16x512xf32>
    %cst_11 = arith.constant 0.000000e+00 : f32
    %10 = vector.broadcast %cst_11 : f32 to vector<16x512xf32>
    %11 = arith.maximumf %9, %10 : vector<16x512xf32>
    %c0_12 = arith.constant 0 : index
    %c0_13 = arith.constant 0 : index
    %12 = vector.load %arg4[%c0_12, %c0_13] : memref<512x128xf32, #tpu.memory_space<vmem>>, vector<512x128xf32>
    %cst_14 = arith.constant dense<0.000000e+00> : vector<16x128xf32>
    %13 = tpu.matmul %11, %12, %cst_14 {dimension_numbers = #tpu.dot_dimension_numbers<[1], [0], [0], [1], [0, 0, 1, 1], [], []>} : vector<16x512xf32>, vector<512x128xf32>, vector<16x128xf32> -> vector<16x128xf32>
    %c0_15 = arith.constant 0 : index
    %c0_16 = arith.constant 0 : index
    %14 = vector.load %arg5[%c0_15, %c0_16] : memref<1x128xf32, #tpu.memory_space<vmem>>, vector<1x128xf32>
    %15 = vector.broadcast %14 : vector<1x128xf32> to vector<16x128xf32>
    %16 = arith.addf %13, %15 : vector<16x128xf32>
    %cst_17 = arith.constant 0.000000e+00 : f32
    %17 = vector.broadcast %cst_17 : f32 to vector<16x128xf32>
    %18 = arith.maximumf %16, %17 : vector<16x128xf32>
    %c0_18 = arith.constant 0 : index
    %c0_19 = arith.constant 0 : index
    %19 = vector.load %arg6[%c0_18, %c0_19] : memref<128x128xf32, #tpu.memory_space<vmem>>, vector<128x128xf32>
    %cst_20 = arith.constant dense<0.000000e+00> : vector<16x128xf32>
    %20 = tpu.matmul %18, %19, %cst_20 {dimension_numbers = #tpu.dot_dimension_numbers<[1], [0], [0], [1], [0, 0, 1, 1], [], []>} : vector<16x128xf32>, vector<128x128xf32>, vector<16x128xf32> -> vector<16x128xf32>
    %c0_21 = arith.constant 0 : index
    %c0_22 = arith.constant 0 : index
    %21 = vector.load %arg7[%c0_21, %c0_22] : memref<1x128xf32, #tpu.memory_space<vmem>>, vector<1x128xf32>
    %22 = vector.broadcast %21 : vector<1x128xf32> to vector<16x128xf32>
    %23 = arith.addf %20, %22 : vector<16x128xf32>
    %c0_23 = arith.constant 0 : index
    %c0_24 = arith.constant 0 : index
    %24 = vector.load %arg8[%c0_23, %c0_24] : memref<16x128xf32, #tpu.memory_space<vmem>>, vector<16x128xf32>
    tpu.vector_store %arg8[%c0_23, %c0_24], %23 {strides = array<i32>} : memref<16x128xf32, #tpu.memory_space<vmem>>, vector<16x128xf32>,
    return
  }
  func.func @transform_0(%arg0: i32) -> (i32, i32) {
    %c0_i32 = arith.constant 0 : i32
    %c0_i32_0 = arith.constant 0 : i32
    return %arg0, %c0_i32 : i32, i32
  }
  func.func @transform_1(%arg0: i32) -> (i32, i32) {
    %c0_i32 = arith.constant 0 : i32
    %c0_i32_0 = arith.constant 0 : i32
    %c0_i32_1 = arith.constant 0 : i32
    return %c0_i32, %c0_i32_0 : i32, i32
  }
  func.func @transform_2(%arg0: i32) -> (i32, i32) {
    %c0_i32 = arith.constant 0 : i32
    %c0_i32_0 = arith.constant 0 : i32
    %c0_i32_1 = arith.constant 0 : i32
    return %c0_i32, %c0_i32_0 : i32, i32
  }
  func.func @transform_3(%arg0: i32) -> (i32, i32) {
    %c0_i32 = arith.constant 0 : i32
    %c0_i32_0 = arith.constant 0 : i32
    %c0_i32_1 = arith.constant 0 : i32
    return %c0_i32, %c0_i32_0 : i32, i32
  }
  func.func @transform_4(%arg0: i32) -> (i32, i32) {
    %c0_i32 = arith.constant 0 : i32
    %c0_i32_0 = arith.constant 0 : i32
    %c0_i32_1 = arith.constant 0 : i32
    return %c0_i32, %c0_i32_0 : i32, i32
  }
  func.func @transform_5(%arg0: i32) -> (i32, i32) {
    %c0_i32 = arith.constant 0 : i32
    %c0_i32_0 = arith.constant 0 : i32
    %c0_i32_1 = arith.constant 0 : i32
    return %c0_i32, %c0_i32_0 : i32, i32
  }
  func.func @transform_6(%arg0: i32) -> (i32, i32) {
    %c0_i32 = arith.constant 0 : i32
    %c0_i32_0 = arith.constant 0 : i32
    %c0_i32_1 = arith.constant 0 : i32
    return %c0_i32, %c0_i32_0 : i32, i32
  }
  func.func @transform_7(%arg0: i32) -> (i32, i32) {
    %c0_i32 = arith.constant 0 : i32
    %c0_i32_0 = arith.constant 0 : i32
    return %arg0, %c0_i32 : i32, i32
  }
}

</mosaic_0001>

<llo_original>
// kernel: gesture_fc_type_consonant_forward.1
$region0: #{gesture_fc_type_consonant_forward.1}
  #allocation0 [shape = 'u32[]', space=smem, size = 0x4, offset = 0x4, fixed_abs, tag = 'smem constant byte address 0x4 - core index']
  #allocation1 [shape = 'u32[144,128]{1,0:T(1,128)}', space=vmem, size = 0x12000, scoped, tag = 'internal scratch']
  #allocation2 [shape = 'f32[16,64]{1,0:T(8,128)}', space=vmem, size = 0x2000, scoped, tag = 'scratch operand']
  %s0 = inlined_call_operand.vmem [shape: f32[16,63], index: 0, kind: input, shape index: {}]
  %s1 = inlined_call_operand.hbm [shape: f32[64,512], index: 1, kind: input, shape index: {}]
  %s2 = inlined_call_operand.vmem [shape: f32[1,512], index: 2, kind: input, shape index: {}]
  %s3 = inlined_call_operand.hbm [shape: f32[512,128], index: 3, kind: input, shape index: {}]
  %s4 = inlined_call_operand.vmem [shape: f32[1,128], index: 4, kind: input, shape index: {}]
  %s5 = inlined_call_operand.vmem [shape: f32[128,128], index: 5, kind: input, shape index: {}]
  %s6 = inlined_call_operand.vmem [shape: f32[1,128], index: 6, kind: input, shape index: {}]
  %s7 = inlined_call_operand.vmem [shape: f32[16,128], index: 7, kind: output, shape index: {}]
  %s8 = sld [smem:[#allocation0]]
  $region46: #{gesture_fc_type_consonant_forward.1} parent=0
    _
  %s10 = ssub.s32 1, %s8
  %s11 = scalar_select 0, %s10, %s8
  $region1: #{gesture_fc_type_consonant_forward.1} parent=0
    #allocation3 [shape = 'u8[131072]{0}', space=vmem, size = 0x20000, scoped, tag = 'input window, operand 1, single buffered']
    #allocation4 [shape = 's32[1]{0}', space=sflag, size = 0x4, scoped, tag = 'scoped memory for gesture_fc_type_consonant_forward.1']
    #allocation5 [shape = 'u8[262144]{0}', space=vmem, size = 0x40000, scoped, tag = 'input window, operand 3, single buffered']
    #allocation6 [shape = 's32[1]{0}', space=sflag, size = 0x4, scoped, tag = 'scoped memory for gesture_fc_type_consonant_forward.1']
    %12 = vsyncpa [#allocation4], 0
    %13 = vsyncpa [#allocation6], 0
    // Predicated region
    $region2: #{gesture_fc_type_consonant_forward.1} parent=1 // pred_check
      _
    $region3: #{gesture_fc_type_consonant_forward.1} parent=1 // pred_check_branch
      %15 = sbr.rel (0) target = $region5
    $region4: #{gesture_fc_type_consonant_forward.1} parent=1 // pred_region
      _
    $region5: #{gesture_fc_type_consonant_forward.1} parent=1 // pred_fallthru
      _
    // Predicated region
    $region6: #{gesture_fc_type_consonant_forward.1} parent=1 // pred_check
      _
    $region7: #{gesture_fc_type_consonant_forward.1} parent=1 // pred_check_branch
      %17 = sbr.rel (0) target = $region9
    $region8: #{gesture_fc_type_consonant_forward.1} parent=1 // pred_region
      %s19 = ssub.s32 4096, 4096
      %20 = vsyncadd [#allocation4], %s19
      %s21 = sshll.u32 [#allocation3], 4
      %s22 = int_to_ptr.vmem [resolvable:$true] %s21
      %27 = dma.hbm_to_vmem [thread:$0]  %s1, 4096, %s22, [#allocation4], 512, 512, 32
    $region9: #{gesture_fc_type_consonant_forward.1} parent=1 // pred_fallthru
      _
    // Predicated region
    $region10: #{gesture_fc_type_consonant_forward.1} parent=1 // pred_check
      _
    $region11: #{gesture_fc_type_consonant_forward.1} parent=1 // pred_check_branch
      %29 = sbr.rel (0) target = $region13
    $region12: #{gesture_fc_type_consonant_forward.1} parent=1 // pred_region
      _
    $region13: #{gesture_fc_type_consonant_forward.1} parent=1 // pred_fallthru
      _
    // Predicated region
    $region14: #{gesture_fc_type_consonant_forward.1} parent=1 // pred_check
      _
    $region15: #{gesture_fc_type_consonant_forward.1} parent=1 // pred_check_branch
      %31 = sbr.rel (0) target = $region17
    $region16: #{gesture_fc_type_consonant_forward.1} parent=1 // pred_region
      %s33 = ssub.s32 8192, 8192
      %34 = vsyncadd [#allocation6], %s33
      %s35 = sshll.u32 [#allocation5], 4
      %s36 = int_to_ptr.vmem [resolvable:$true] %s35
      %41 = dma.hbm_to_vmem [thread:$0]  %s3, 8192, %s36, [#allocation6], 128, 128, 8
    $region17: #{gesture_fc_type_consonant_forward.1} parent=1 // pred_fallthru
      _
    // Predicated region
    $region18: #{gesture_fc_type_consonant_forward.1} parent=1 // pred_check
      _
    $region19: #{gesture_fc_type_consonant_forward.1} parent=1 // pred_check_branch
      %43 = sbr.rel (0) target = $region21
    $region20: #{gesture_fc_type_consonant_forward.1} parent=1 // pred_region
      _
    $region21: #{gesture_fc_type_consonant_forward.1} parent=1 // pred_fallthru
      _
    // Predicated region
    $region22: #{gesture_fc_type_consonant_forward.1} parent=1 // pred_check
      _
    $region23: #{gesture_fc_type_consonant_forward.1} parent=1 // pred_check_branch
      %45 = sbr.rel (0) target = $region25
    $region24: #{gesture_fc_type_consonant_forward.1} parent=1 // pred_region
      _
    $region25: #{gesture_fc_type_consonant_forward.1} parent=1 // pred_fallthru
      _
    // Predicated region
    $region26: #{gesture_fc_type_consonant_forward.1} parent=1 // pred_check
      _
    $region27: #{gesture_fc_type_consonant_forward.1} parent=1 // pred_check_branch
      %47 = sbr.rel (0) target = $region29
    $region28: #{gesture_fc_type_consonant_forward.1} parent=1 // pred_region
      _
    $region29: #{gesture_fc_type_consonant_forward.1} parent=1 // pred_fallthru
      _
    // Predicated region
    $region30: #{gesture_fc_type_consonant_forward.1} parent=1 // pred_check
      _
    $region31: #{gesture_fc_type_consonant_forward.1} parent=1 // pred_check_branch
      %49 = sbr.rel (0) target = $region33
    $region32: #{gesture_fc_type_consonant_forward.1} parent=1 // pred_region
      %50 = dma.done [#allocation4], 4096
    $region33: #{gesture_fc_type_consonant_forward.1} parent=1 // pred_fallthru
      _
    // Predicated region
    $region34: #{gesture_fc_type_consonant_forward.1} parent=1 // pred_check
      _
    $region35: #{gesture_fc_type_consonant_forward.1} parent=1 // pred_check_branch
      %52 = sbr.rel (0) target = $region37
    $region36: #{gesture_fc_type_consonant_forward.1} parent=1 // pred_region
      %53 = dma.done [#allocation6], 8192
    $region37: #{gesture_fc_type_consonant_forward.1} parent=1 // pred_fallthru
      _
    %v54 = vld [vmem:[%s0] sm:$0xff]
    %v55 = vld [vmem:[%s0 + $0x8] sm:$0xff]
    %vm56 = vcmask 515072
    %57 = vst.msk [vmem:[#allocation2] sm:$0xff] %vm56, %v54
    %58 = vst.msk [vmem:[#allocation2 + $0x8] sm:$0xff] %vm56, %v55
    %vm59 = vcmask 523768
    %60 = vst.msk [vmem:[#allocation2] sm:$0xff] %vm59, 0.0
    %61 = vst.msk [vmem:[#allocation2 + $0x8] sm:$0xff] %vm59, 0.0
    %v62 = vld [vmem:[#allocation2] sm:$0xff]
    %v63 = vld [vmem:[#allocation2 + $0x8] sm:$0xff]
    %v64 = vld [vmem:[#allocation3] sm:$0xff]
    %v65 = vld [vmem:[#allocation3 + $0x8] sm:$0xff]
    %v66 = vld [vmem:[#allocation3 + $0x10] sm:$0xff]
    %v67 = vld [vmem:[#allocation3 + $0x18] sm:$0xff]
    %v68 = vld [vmem:[#allocation3 + $0x20] sm:$0xff]
    %v69 = vld [vmem:[#allocation3 + $0x28] sm:$0xff]
    %v70 = vld [vmem:[#allocation3 + $0x30] sm:$0xff]
    %v71 = vld [vmem:[#allocation3 + $0x38] sm:$0xff]
    %v72 = vld [vmem:[#allocation3 + $0x40] sm:$0xff]
    %v73 = vld [vmem:[#allocation3 + $0x48] sm:$0xff]
    %v74 = vld [vmem:[#allocation3 + $0x50] sm:$0xff]
    %v75 = vld [vmem:[#allocation3 + $0x58] sm:$0xff]
    %v76 = vld [vmem:[#allocation3 + $0x60] sm:$0xff]
    %v77 = vld [vmem:[#allocation3 + $0x68] sm:$0xff]
    %v78 = vld [vmem:[#allocation3 + $0x70] sm:$0xff]
    %v79 = vld [vmem:[#allocation3 + $0x78] sm:$0xff]
    %v80 = vld [vmem:[#allocation3 + $0x80] sm:$0xff]
    %v81 = vld [vmem:[#allocation3 + $0x88] sm:$0xff]
    %v82 = vld [vmem:[#allocation3 + $0x90] sm:$0xff]
    %v83 = vld [vmem:[#allocation3 + $0x98] sm:$0xff]
    %v84 = vld [vmem:[#allocation3 + $0xa0] sm:$0xff]
    %v85 = vld [vmem:[#allocation3 + $0xa8] sm:$0xff]
    %v86 = vld [vmem:[#allocation3 + $0xb0] sm:$0xff]
    %v87 = vld [vmem:[#allocation3 + $0xb8] sm:$0xff]
    %v88 = vld [vmem:[#allocation3 + $0xc0] sm:$0xff]
    %v89 = vld [vmem:[#allocation3 + $0xc8] sm:$0xff]
    %v90 = vld [vmem:[#allocation3 + $0xd0] sm:$0xff]
    %v91 = vld [vmem:[#allocation3 + $0xd8] sm:$0xff]
    %v92 = vld [vmem:[#allocation3 + $0xe0] sm:$0xff]
    %v93 = vld [vmem:[#allocation3 + $0xe8] sm:$0xff]
    %v94 = vld [vmem:[#allocation3 + $0xf0] sm:$0xff]
    %v95 = vld [vmem:[#allocation3 + $0xf8] sm:$0xff]
    %v96 = vld [vmem:[%s2] sm:$0xf]
    %v98 = vlaneseq
    %v99 = vshrl.u32 %v98, 7
    %v100 = vsub.s32 0, %v99
    %v101 = vrot.slane %v96, %v100
    %v102 = vlaneseq
    %v103 = vshrl.u32 %v102, 7
    %v104 = vsub.s32 1, %v103
    %v105 = vrot.slane %v96, %v104
    %v106 = vlaneseq
    %v107 = vshrl.u32 %v106, 7
    %v108 = vsub.s32 2, %v107
    %v109 = vrot.slane %v96, %v108
    %v110 = vlaneseq
    %v111 = vshrl.u32 %v110, 7
    %v112 = vsub.s32 3, %v111
    %v113 = vrot.slane %v96, %v112
    %vm118 = vcmask 523264
    %v120 = vsel %vm118, %v62, 0
    %v123 = vsel %vm118, %v63, 0
    %125 = vmatprep.subr.mxu0 %v65
    %126 = vmatpush1.msra.mxu0 %v64
    %127 = vmatprep.subr.mxu0 %v69
    %128 = vmatpush1.msra.mxu0 %v68
    %129 = vmatprep.subr.mxu0 %v73
    %130 = vmatpush1.msra.mxu0 %v72
    %131 = vmatprep.subr.mxu0 %v77
    %132 = vmatpush1.msra.mxu0 %v76
    %133 = vmatprep.subr.mxu0 %v81
    %134 = vmatpush1.msra.mxu0 %v80
    %135 = vmatprep.subr.mxu0 %v85
    %136 = vmatpush1.msra.mxu0 %v84
    %137 = vmatprep.subr.mxu0 %v89
    %138 = vmatpush1.msra.mxu0 %v88
    %139 = vmatprep.subr.mxu0 %v93
    %140 = vmatpush1.msra.mxu0 %v92
    %141 = vmatprep.subr.mxu0 0.0
    %142 = vmatpush1.msra.mxu0 0.0
    %143 = vmatprep.subr.mxu0 0.0
    %144 = vmatpush1.msra.mxu0 0.0
    %145 = vmatprep.subr.mxu0 0.0
    %146 = vmatpush1.msra.mxu0 0.0
    %147 = vmatprep.subr.mxu0 0.0
    %148 = vmatpush1.msra.mxu0 0.0
    %149 = vmatprep.subr.mxu0 0.0
    %150 = vmatpush1.msra.mxu0 0.0
    %151 = vmatprep.subr.mxu0 0.0
    %152 = vmatpush1.msra.mxu0 0.0
    %153 = vmatprep.subr.mxu0 0.0
    %154 = vmatpush1.msra.mxu0 0.0
    %155 = vmatprep.subr.mxu0 0.0
    %156 = vmatpush1.msra.mxu0 0.0
    %157 = vmatprep.subr.mxu0 0.0
    %158 = vmatpush1.msra.mxu0 0.0
    %159 = vmatprep.subr.mxu0 0.0
    %160 = vmatpush1.msra.mxu0 0.0
    %161 = vmatprep.subr.mxu0 0.0
    %162 = vmatpush1.msra.mxu0 0.0
    %163 = vmatprep.subr.mxu0 0.0
    %164 = vmatpush1.msra.mxu0 0.0
    %165 = vmatprep.subr.mxu0 0.0
    %166 = vmatpush1.msra.mxu0 0.0
    %167 = vmatprep.subr.mxu0 0.0
    %168 = vmatpush1.msra.mxu0 0.0
    %169 = vmatprep.subr.mxu0 0.0
    %170 = vmatpush1.msra.mxu0 0.0
    %171 = vmatprep.subr.mxu0 0.0
    %172 = vmatpush1.msra.mxu0 0.0
    %173 = vmatprep.subr.mxu0 0.0
    %174 = vmatpush1.msra.mxu0 0.0
    %175 = vmatprep.subr.mxu0 0.0
    %176 = vmatpush1.msra.mxu0 0.0
    %177 = vmatprep.subr.mxu0 0.0
    %178 = vmatpush1.msra.mxu0 0.0
    %179 = vmatprep.subr.mxu0 0.0
    %180 = vmatpush1.msra.mxu0 0.0
    %181 = vmatprep.subr.mxu0 0.0
    %182 = vmatpush1.msra.mxu0 0.0
    %183 = vmatprep.subr.mxu0 0.0
    %184 = vmatpush1.msra.mxu0 0.0
    %185 = vmatprep.subr.mxu0 0.0
    %186 = vmatpush1.msra.mxu0 0.0
    %187 = vmatprep.subr.mxu0 0.0
    %188 = vmatpush1.msra.mxu0 0.0
    %189 = vmatprep.mubr.f32.mxu0 0.0
    %190 = vmatmul.mubr.f32.gmra.mrb[0].mxu0 %v120
    %v191 = vpop.f32.mrb[0].mxu0
    %v192 = vadd.f32 %v101, %v191
    %v193 = vpop.f32.mrb[0].mxu0
    %v194 = vadd.f32 %v105, %v193
    %195 = vmatprep.mubr.f32.mxu0 0.0
    %196 = vmatmul.mubr.f32.gmra.mrb[0].mxu0 %v123
    %v197 = vpop.f32.mrb[0].mxu0
    %v198 = vadd.f32 %v101, %v197
    %v199 = vpop.f32.mrb[0].mxu0
    %v200 = vadd.f32 %v105, %v199
    %201 = vdwg.mxu0
    %202 = vmatprep.subr.mxu0 %v67
    %203 = vmatpush1.msra.mxu0 %v66
    %204 = vmatprep.subr.mxu0 %v71
    %205 = vmatpush1.msra.mxu0 %v70
    %206 = vmatprep.subr.mxu0 %v75
    %207 = vmatpush1.msra.mxu0 %v74
    %208 = vmatprep.subr.mxu0 %v79
    %209 = vmatpush1.msra.mxu0 %v78
    %210 = vmatprep.subr.mxu0 %v83
    %211 = vmatpush1.msra.mxu0 %v82
    %212 = vmatprep.subr.mxu0 %v87
    %213 = vmatpush1.msra.mxu0 %v86
    %214 = vmatprep.subr.mxu0 %v91
    %215 = vmatpush1.msra.mxu0 %v90
    %216 = vmatprep.subr.mxu0 %v95
    %217 = vmatpush1.msra.mxu0 %v94
    %218 = vmatprep.subr.mxu0 0.0
    %219 = vmatpush1.msra.mxu0 0.0
    %220 = vmatprep.subr.mxu0 0.0
    %221 = vmatpush1.msra.mxu0 0.0
    %222 = vmatprep.subr.mxu0 0.0
    %223 = vmatpush1.msra.mxu0 0.0
    %224 = vmatprep.subr.mxu0 0.0
    %225 = vmatpush1.msra.mxu0 0.0
    %226 = vmatprep.subr.mxu0 0.0
    %227 = vmatpush1.msra.mxu0 0.0
    %228 = vmatprep.subr.mxu0 0.0
    %229 = vmatpush1.msra.mxu0 0.0
    %230 = vmatprep.subr.mxu0 0.0
    %231 = vmatpush1.msra.mxu0 0.0
    %232 = vmatprep.subr.mxu0 0.0
    %233 = vmatpush1.msra.mxu0 0.0
    %234 = vmatprep.subr.mxu0 0.0
    %235 = vmatpush1.msra.mxu0 0.0
    %236 = vmatprep.subr.mxu0 0.0
    %237 = vmatpush1.msra.mxu0 0.0
    %238 = vmatprep.subr.mxu0 0.0
    %239 = vmatpush1.msra.mxu0 0.0
    %240 = vmatprep.subr.mxu0 0.0
    %241 = vmatpush1.msra.mxu0 0.0
    %242 = vmatprep.subr.mxu0 0.0
    %243 = vmatpush1.msra.mxu0 0.0
    %244 = vmatprep.subr.mxu0 0.0
    %245 = vmatpush1.msra.mxu0 0.0
    %246 = vmatprep.subr.mxu0 0.0
    %247 = vmatpush1.msra.mxu0 0.0
    %248 = vmatprep.subr.mxu0 0.0
    %249 = vmatpush1.msra.mxu0 0.0
    %250 = vmatprep.subr.mxu0 0.0
    %251 = vmatpush1.msra.mxu0 0.0
    %252 = vmatprep.subr.mxu0 0.0
    %253 = vmatpush1.msra.mxu0 0.0
    %254 = vmatprep.subr.mxu0 0.0
    %255 = vmatpush1.msra.mxu0 0.0
    %256 = vmatprep.subr.mxu0 0.0
    %257 = vmatpush1.msra.mxu0 0.0
    %258 = vmatprep.subr.mxu0 0.0
    %259 = vmatpush1.msra.mxu0 0.0
    %260 = vmatprep.subr.mxu0 0.0
    %261 = vmatpush1.msra.mxu0 0.0
    %262 = vmatprep.subr.mxu0 0.0
    %263 = vmatpush1.msra.mxu0 0.0
    %264 = vmatprep.subr.mxu0 0.0
    %265 = vmatpush1.msra.mxu0 0.0
    %266 = vmatprep.mubr.f32.mxu0 0.0
    %267 = vmatmul.mubr.f32.gmra.mrb[0].mxu0 %v120
    %v268 = vpop.f32.mrb[0].mxu0
    %v269 = vadd.f32 %v109, %v268
    %v270 = vpop.f32.mrb[0].mxu0
    %v271 = vadd.f32 %v113, %v270
    %272 = vmatprep.mubr.f32.mxu0 0.0
    %273 = vmatmul.mubr.f32.gmra.mrb[0].mxu0 %v123
    %v274 = vpop.f32.mrb[0].mxu0
    %v275 = vadd.f32 %v109, %v274
    %v276 = vpop.f32.mrb[0].mxu0
    %v277 = vadd.f32 %v113, %v276
    %278 = vdwg.mxu0
    %v279 = vmax.f32 %v192, 0.0
    %v280 = vmax.f32 %v194, 0.0
    %v281 = vmax.f32 %v269, 0.0
    %v282 = vmax.f32 %v271, 0.0
    %v283 = vmax.f32 %v198, 0.0
    %v284 = vmax.f32 %v200, 0.0
    %v285 = vmax.f32 %v275, 0.0
    %v286 = vmax.f32 %v277, 0.0
    %v287 = vld [vmem:[#allocation5] sm:$0xff]
    %v288 = vld [vmem:[#allocation5 + $0x8] sm:$0xff]
    %v289 = vld [vmem:[#allocation5 + $0x10] sm:$0xff]
    %v290 = vld [vmem:[#allocation5 + $0x18] sm:$0xff]
    %v291 = vld [vmem:[#allocation5 + $0x20] sm:$0xff]
    %v292 = vld [vmem:[#allocation5 + $0x28] sm:$0xff]
    %v293 = vld [vmem:[#allocation5 + $0x30] sm:$0xff]
    %v294 = vld [vmem:[#allocation5 + $0x38] sm:$0xff]
    %v295 = vld [vmem:[#allocation5 + $0x40] sm:$0xff]
    %v296 = vld [vmem:[#allocation5 + $0x48] sm:$0xff]
    %v297 = vld [vmem:[#allocation5 + $0x50] sm:$0xff]
    %v298 = vld [vmem:[#allocation5 + $0x58] sm:$0xff]
    %v299 = vld [vmem:[#allocation5 + $0x60] sm:$0xff]
    %v300 = vld [vmem:[#allocation5 + $0x68] sm:$0xff]
    %v301 = vld [vmem:[#allocation5 + $0x70] sm:$0xff]
    %v302 = vld [vmem:[#allocation5 + $0x78] sm:$0xff]
    %v303 = vld [vmem:[#allocation5 + $0x80] sm:$0xff]
    %v304 = vld [vmem:[#allocation5 + $0x88] sm:$0xff]
    %v305 = vld [vmem:[#allocation5 + $0x90] sm:$0xff]
    %v306 = vld [vmem:[#allocation5 + $0x98] sm:$0xff]
    %v307 = vld [vmem:[#allocation5 + $0xa0] sm:$0xff]
    %v308 = vld [vmem:[#allocation5 + $0xa8] sm:$0xff]
    %v309 = vld [vmem:[#allocation5 + $0xb0] sm:$0xff]
    %v310 = vld [vmem:[#allocation5 + $0xb8] sm:$0xff]
    %v311 = vld [vmem:[#allocation5 + $0xc0] sm:$0xff]
    %v312 = vld [vmem:[#allocation5 + $0xc8] sm:$0xff]
    %v313 = vld [vmem:[#allocation5 + $0xd0] sm:$0xff]
    %v314 = vld [vmem:[#allocation5 + $0xd8] sm:$0xff]
    %v315 = vld [vmem:[#allocation5 + $0xe0] sm:$0xff]
    %v316 = vld [vmem:[#allocation5 + $0xe8] sm:$0xff]
    %v317 = vld [vmem:[#allocation5 + $0xf0] sm:$0xff]
    %v318 = vld [vmem:[#allocation5 + $0xf8] sm:$0xff]
    %v319 = vld [vmem:[#allocation5 + $0x100] sm:$0xff]
    %v320 = vld [vmem:[#allocation5 + $0x108] sm:$0xff]
    %v321 = vld [vmem:[#allocation5 + $0x110] sm:$0xff]
    %v322 = vld [vmem:[#allocation5 + $0x118] sm:$0xff]
    %v323 = vld [vmem:[#allocation5 + $0x120] sm:$0xff]
    %v324 = vld [vmem:[#allocation5 + $0x128] sm:$0xff]
    %v325 = vld [vmem:[#allocation5 + $0x130] sm:$0xff]
    %v326 = vld [vmem:[#allocation5 + $0x138] sm:$0xff]
    %v327 = vld [vmem:[#allocation5 + $0x140] sm:$0xff]
    %v328 = vld [vmem:[#allocation5 + $0x148] sm:$0xff]
    %v329 = vld [vmem:[#allocation5 + $0x150] sm:$0xff]
    %v330 = vld [vmem:[#allocation5 + $0x158] sm:$0xff]
    %v331 = vld [vmem:[#allocation5 + $0x160] sm:$0xff]
    %v332 = vld [vmem:[#allocation5 + $0x168] sm:$0xff]
    %v333 = vld [vmem:[#allocation5 + $0x170] sm:$0xff]
    %v334 = vld [vmem:[#allocation5 + $0x178] sm:$0xff]
    %v335 = vld [vmem:[#allocation5 + $0x180] sm:$0xff]
    %v336 = vld [vmem:[#allocation5 + $0x188] sm:$0xff]
    %v337 = vld [vmem:[#allocation5 + $0x190] sm:$0xff]
    %v338 = vld [vmem:[#allocation5 + $0x198] sm:$0xff]
    %v339 = vld [vmem:[#allocation5 + $0x1a0] sm:$0xff]
    %v340 = vld [vmem:[#allocation5 + $0x1a8] sm:$0xff]
    %v341 = vld [vmem:[#allocation5 + $0x1b0] sm:$0xff]
    %v342 = vld [vmem:[#allocation5 + $0x1b8] sm:$0xff]
    %v343 = vld [vmem:[#allocation5 + $0x1c0] sm:$0xff]
    %v344 = vld [vmem:[#allocation5 + $0x1c8] sm:$0xff]
    %v345 = vld [vmem:[#allocation5 + $0x1d0] sm:$0xff]
    %v346 = vld [vmem:[#allocation5 + $0x1d8] sm:$0xff]
    %v347 = vld [vmem:[#allocation5 + $0x1e0] sm:$0xff]
    %v348 = vld [vmem:[#allocation5 + $0x1e8] sm:$0xff]
    %v349 = vld [vmem:[#allocation5 + $0x1f0] sm:$0xff]
    %v350 = vld [vmem:[#allocation5 + $0x1f8] sm:$0xff]
    %v351 = vld [vmem:[%s4] sm:$0x1]
    %v353 = vlaneseq
    %v354 = vshrl.u32 %v353, 7
    %v355 = vsub.s32 0, %v354
    %v356 = vrot.slane %v351, %v355
    %358 = vmatprep.subr.mxu0 0.0
    %359 = vmatpush1.msra.mxu0 %v287
    %360 = vmatprep.subr.mxu0 0.0
    %361 = vmatpush1.msra.mxu0 %v288
    %362 = vmatprep.subr.mxu0 0.0
    %363 = vmatpush1.msra.mxu0 %v289
    %364 = vmatprep.subr.mxu0 0.0
    %365 = vmatpush1.msra.mxu0 %v290
    %366 = vmatprep.subr.mxu0 0.0
    %367 = vmatpush1.msra.mxu0 %v291
    %368 = vmatprep.subr.mxu0 0.0
    %369 = vmatpush1.msra.mxu0 %v292
    %370 = vmatprep.subr.mxu0 0.0
    %371 = vmatpush1.msra.mxu0 %v293
    %372 = vmatprep.subr.mxu0 0.0
    %373 = vmatpush1.msra.mxu0 %v294
    %374 = vmatprep.subr.mxu0 0.0
    %375 = vmatpush1.msra.mxu0 %v295
    %376 = vmatprep.subr.mxu0 0.0
    %377 = vmatpush1.msra.mxu0 %v296
    %378 = vmatprep.subr.mxu0 0.0
    %379 = vmatpush1.msra.mxu0 %v297
    %380 = vmatprep.subr.mxu0 0.0
    %381 = vmatpush1.msra.mxu0 %v298
    %382 = vmatprep.subr.mxu0 0.0
    %383 = vmatpush1.msra.mxu0 %v299
    %384 = vmatprep.subr.mxu0 0.0
    %385 = vmatpush1.msra.mxu0 %v300
    %386 = vmatprep.subr.mxu0 0.0
    %387 = vmatpush1.msra.mxu0 %v301
    %388 = vmatprep.subr.mxu0 0.0
    %389 = vmatpush1.msra.mxu0 %v302
    %390 = vmatprep.subr.mxu0 0.0
    %391 = vmatpush1.msra.mxu0 %v303
    %392 = vmatprep.subr.mxu0 0.0
    %393 = vmatpush1.msra.mxu0 %v304
    %394 = vmatprep.subr.mxu0 0.0
    %395 = vmatpush1.msra.mxu0 %v305
    %396 = vmatprep.subr.mxu0 0.0
    %397 = vmatpush1.msra.mxu0 %v306
    %398 = vmatprep.subr.mxu0 0.0
    %399 = vmatpush1.msra.mxu0 %v307
    %400 = vmatprep.subr.mxu0 0.0
    %401 = vmatpush1.msra.mxu0 %v308
    %402 = vmatprep.subr.mxu0 0.0
    %403 = vmatpush1.msra.mxu0 %v309
    %404 = vmatprep.subr.mxu0 0.0
    %405 = vmatpush1.msra.mxu0 %v310
    %406 = vmatprep.subr.mxu0 0.0
    %407 = vmatpush1.msra.mxu0 %v311
    %408 = vmatprep.subr.mxu0 0.0
    %409 = vmatpush1.msra.mxu0 %v312
    %410 = vmatprep.subr.mxu0 0.0
    %411 = vmatpush1.msra.mxu0 %v313
    %412 = vmatprep.subr.mxu0 0.0
    %413 = vmatpush1.msra.mxu0 %v314
    %414 = vmatprep.subr.mxu0 0.0
    %415 = vmatpush1.msra.mxu0 %v315
    %416 = vmatprep.subr.mxu0 0.0
    %417 = vmatpush1.msra.mxu0 %v316
    %418 = vmatprep.subr.mxu0 0.0
    %419 = vmatpush1.msra.mxu0 %v317
    %420 = vmatprep.subr.mxu0 0.0
    %421 = vmatpush1.msra.mxu0 %v318
    %422 = vmatprep.mubr.f32.mxu0 %v280
    %423 = vmatmul.mubr.f32.gmra.mrb[0].mxu0 %v279
    %v424 = vpop.f32.mrb[0].mxu0
    %v425 = vadd.f32 %v356, %v424
    %v426 = vpop.f32.mrb[0].mxu0
    %427 = vmatprep.mubr.f32.mxu0 %v284
    %428 = vmatmul.mubr.f32.gmra.mrb[0].mxu0 %v283
    %v429 = vpop.f32.mrb[0].mxu0
    %v430 = vadd.f32 %v356, %v429
    %v431 = vpop.f32.mrb[0].mxu0
    %432 = vdwg.mxu0
    %433 = vmatprep.subr.mxu0 0.0
    %434 = vmatpush1.msra.mxu0 %v319
    %435 = vmatprep.subr.mxu0 0.0
    %436 = vmatpush1.msra.mxu0 %v320
    %437 = vmatprep.subr.mxu0 0.0
    %438 = vmatpush1.msra.mxu0 %v321
    %439 = vmatprep.subr.mxu0 0.0
    %440 = vmatpush1.msra.mxu0 %v322
    %441 = vmatprep.subr.mxu0 0.0
    %442 = vmatpush1.msra.mxu0 %v323
    %443 = vmatprep.subr.mxu0 0.0
    %444 = vmatpush1.msra.mxu0 %v324
    %445 = vmatprep.subr.mxu0 0.0
    %446 = vmatpush1.msra.mxu0 %v325
    %447 = vmatprep.subr.mxu0 0.0
    %448 = vmatpush1.msra.mxu0 %v326
    %449 = vmatprep.subr.mxu0 0.0
    %450 = vmatpush1.msra.mxu0 %v327
    %451 = vmatprep.subr.mxu0 0.0
    %452 = vmatpush1.msra.mxu0 %v328
    %453 = vmatprep.subr.mxu0 0.0
    %454 = vmatpush1.msra.mxu0 %v329
    %455 = vmatprep.subr.mxu0 0.0
    %456 = vmatpush1.msra.mxu0 %v330
    %457 = vmatprep.subr.mxu0 0.0
    %458 = vmatpush1.msra.mxu0 %v331
    %459 = vmatprep.subr.mxu0 0.0
    %460 = vmatpush1.msra.mxu0 %v332
    %461 = vmatprep.subr.mxu0 0.0
    %462 = vmatpush1.msra.mxu0 %v333
    %463 = vmatprep.subr.mxu0 0.0
    %464 = vmatpush1.msra.mxu0 %v334
    %465 = vmatprep.subr.mxu0 0.0
    %466 = vmatpush1.msra.mxu0 %v335
    %467 = vmatprep.subr.mxu0 0.0
    %468 = vmatpush1.msra.mxu0 %v336
    %469 = vmatprep.subr.mxu0 0.0
    %470 = vmatpush1.msra.mxu0 %v337
    %471 = vmatprep.subr.mxu0 0.0
    %472 = vmatpush1.msra.mxu0 %v338
    %473 = vmatprep.subr.mxu0 0.0
    %474 = vmatpush1.msra.mxu0 %v339
    %475 = vmatprep.subr.mxu0 0.0
    %476 = vmatpush1.msra.mxu0 %v340
    %477 = vmatprep.subr.mxu0 0.0
    %478 = vmatpush1.msra.mxu0 %v341
    %479 = vmatprep.subr.mxu0 0.0
    %480 = vmatpush1.msra.mxu0 %v342
    %481 = vmatprep.subr.mxu0 0.0
    %482 = vmatpush1.msra.mxu0 %v343
    %483 = vmatprep.subr.mxu0 0.0
    %484 = vmatpush1.msra.mxu0 %v344
    %485 = vmatprep.subr.mxu0 0.0
    %486 = vmatpush1.msra.mxu0 %v345
    %487 = vmatprep.subr.mxu0 0.0
    %488 = vmatpush1.msra.mxu0 %v346
    %489 = vmatprep.subr.mxu0 0.0
    %490 = vmatpush1.msra.mxu0 %v347
    %491 = vmatprep.subr.mxu0 0.0
    %492 = vmatpush1.msra.mxu0 %v348
    %493 = vmatprep.subr.mxu0 0.0
    %494 = vmatpush1.msra.mxu0 %v349
    %495 = vmatprep.subr.mxu0 0.0
    %496 = vmatpush1.msra.mxu0 %v350
    %497 = vmatprep.mubr.f32.mxu0 %v282
    %498 = vmatmul.mubr.f32.gmra.mrb[0].mxu0 %v281
    %v499 = vpop.f32.mrb[0].mxu0
    %v500 = vadd.f32 %v425, %v499
    %v501 = vpop.f32.mrb[0].mxu0
    %502 = vmatprep.mubr.f32.mxu0 %v286
    %503 = vmatmul.mubr.f32.gmra.mrb[0].mxu0 %v285
    %v504 = vpop.f32.mrb[0].mxu0
    %v505 = vadd.f32 %v430, %v504
    %v506 = vpop.f32.mrb[0].mxu0
    %507 = vdwg.mxu0
    %v508 = vmax.f32 %v500, 0.0
    %v509 = vmax.f32 %v505, 0.0
    %v510 = vld [vmem:[%s5] sm:$0xff]
    %v511 = vld [vmem:[%s5 + $0x8] sm:$0xff]
    %v512 = vld [vmem:[%s5 + $0x10] sm:$0xff]
    %v513 = vld [vmem:[%s5 + $0x18] sm:$0xff]
    %v514 = vld [vmem:[%s5 + $0x20] sm:$0xff]
    %v515 = vld [vmem:[%s5 + $0x28] sm:$0xff]
    %v516 = vld [vmem:[%s5 + $0x30] sm:$0xff]
    %v517 = vld [vmem:[%s5 + $0x38] sm:$0xff]
    %v518 = vld [vmem:[%s5 + $0x40] sm:$0xff]
    %v519 = vld [vmem:[%s5 + $0x48] sm:$0xff]
    %v520 = vld [vmem:[%s5 + $0x50] sm:$0xff]
    %v521 = vld [vmem:[%s5 + $0x58] sm:$0xff]
    %v522 = vld [vmem:[%s5 + $0x60] sm:$0xff]
    %v523 = vld [vmem:[%s5 + $0x68] sm:$0xff]
    %v524 = vld [vmem:[%s5 + $0x70] sm:$0xff]
    %v525 = vld [vmem:[%s5 + $0x78] sm:$0xff]
    %v526 = vld [vmem:[%s6] sm:$0x1]
    %v528 = vlaneseq
    %v529 = vshrl.u32 %v528, 7
    %v530 = vsub.s32 0, %v529
    %v531 = vrot.slane %v526, %v530
    %533 = vmatprep.subr.mxu0 0.0
    %534 = vmatpush1.msra.mxu0 %v510
    %535 = vmatprep.subr.mxu0 0.0
    %536 = vmatpush1.msra.mxu0 %v511
    %537 = vmatprep.subr.mxu0 0.0
    %538 = vmatpush1.msra.mxu0 %v512
    %539 = vmatprep.subr.mxu0 0.0
    %540 = vmatpush1.msra.mxu0 %v513
    %541 = vmatprep.subr.mxu0 0.0
    %542 = vmatpush1.msra.mxu0 %v514
    %543 = vmatprep.subr.mxu0 0.0
    %544 = vmatpush1.msra.mxu0 %v515
    %545 = vmatprep.subr.mxu0 0.0
    %546 = vmatpush1.msra.mxu0 %v516
    %547 = vmatprep.subr.mxu0 0.0
    %548 = vmatpush1.msra.mxu0 %v517
    %549 = vmatprep.subr.mxu0 0.0
    %550 = vmatpush1.msra.mxu0 %v518
    %551 = vmatprep.subr.mxu0 0.0
    %552 = vmatpush1.msra.mxu0 %v519
    %553 = vmatprep.subr.mxu0 0.0
    %554 = vmatpush1.msra.mxu0 %v520
    %555 = vmatprep.subr.mxu0 0.0
    %556 = vmatpush1.msra.mxu0 %v521
    %557 = vmatprep.subr.mxu0 0.0
    %558 = vmatpush1.msra.mxu0 %v522
    %559 = vmatprep.subr.mxu0 0.0
    %560 = vmatpush1.msra.mxu0 %v523
    %561 = vmatprep.subr.mxu0 0.0
    %562 = vmatpush1.msra.mxu0 %v524
    %563 = vmatprep.subr.mxu0 0.0
    %564 = vmatpush1.msra.mxu0 %v525
    %565 = vmatprep.subr.mxu0 0.0
    %566 = vmatpush1.msra.mxu0 0.0
    %567 = vmatprep.subr.mxu0 0.0
    %568 = vmatpush1.msra.mxu0 0.0
    %569 = vmatprep.subr.mxu0 0.0
    %570 = vmatpush1.msra.mxu0 0.0
    %571 = vmatprep.subr.mxu0 0.0
    %572 = vmatpush1.msra.mxu0 0.0
    %573 = vmatprep.subr.mxu0 0.0
    %574 = vmatpush1.msra.mxu0 0.0
    %575 = vmatprep.subr.mxu0 0.0
    %576 = vmatpush1.msra.mxu0 0.0
    %577 = vmatprep.subr.mxu0 0.0
    %578 = vmatpush1.msra.mxu0 0.0
    %579 = vmatprep.subr.mxu0 0.0
    %580 = vmatpush1.msra.mxu0 0.0
    %581 = vmatprep.subr.mxu0 0.0
    %582 = vmatpush1.msra.mxu0 0.0
    %583 = vmatprep.subr.mxu0 0.0
    %584 = vmatpush1.msra.mxu0 0.0
    %585 = vmatprep.subr.mxu0 0.0
    %586 = vmatpush1.msra.mxu0 0.0
    %587 = vmatprep.subr.mxu0 0.0
    %588 = vmatpush1.msra.mxu0 0.0
    %589 = vmatprep.subr.mxu0 0.0
    %590 = vmatpush1.msra.mxu0 0.0
    %591 = vmatprep.subr.mxu0 0.0
    %592 = vmatpush1.msra.mxu0 0.0
    %593 = vmatprep.subr.mxu0 0.0
    %594 = vmatpush1.msra.mxu0 0.0
    %595 = vmatprep.subr.mxu0 0.0
    %596 = vmatpush1.msra.mxu0 0.0
    %597 = vmatprep.mubr.f32.mxu0 0.0
    %598 = vmatmul.mubr.f32.gmra.mrb[0].mxu0 %v508
    %v599 = vpop.f32.mrb[0].mxu0
    %v600 = vadd.f32 %v531, %v599
    %v601 = vpop.f32.mrb[0].mxu0
    %602 = vmatprep.mubr.f32.mxu0 0.0
    %603 = vmatmul.mubr.f32.gmra.mrb[0].mxu0 %v509
    %v604 = vpop.f32.mrb[0].mxu0
    %v605 = vadd.f32 %v531, %v604
    %v606 = vpop.f32.mrb[0].mxu0
    %607 = vdwg.mxu0
    %608 = vst [vmem:[%s7] sm:$0xff] %v600
    %609 = vst [vmem:[%s7 + $0x8] sm:$0xff] %v605
    // Predicated region
    $region38: #{gesture_fc_type_consonant_forward.1} parent=1 // pred_check
      _
    $region39: #{gesture_fc_type_consonant_forward.1} parent=1 // pred_check_branch
      %611 = sbr.rel (0) target = $region41
    $region40: #{gesture_fc_type_consonant_forward.1} parent=1 // pred_region
      _
    $region41: #{gesture_fc_type_consonant_forward.1} parent=1 // pred_fallthru
      _
    // Predicated region
    $region42: #{gesture_fc_type_consonant_forward.1} parent=1 // pred_check
      _
    $region43: #{gesture_fc_type_consonant_forward.1} parent=1 // pred_check_branch
      %613 = sbr.rel (0) target = $region45
    $region44: #{gesture_fc_type_consonant_forward.1} parent=1 // pred_region
      _
    $region45: #{gesture_fc_type_consonant_forward.1} parent=1 // pred_fallthru
      _
    %614 = vsyncpa [#allocation4], 1
    %615 = vsyncpa [#allocation6], 1

</llo_original>
